<compile_context>
chip_gen: v5e
topology: v5e:2x2
jax: 0.10.0
libtpu: 0.0.40
codegen_flags: <defaults>
</compile_context>

<pallas_src>
import functools

import numpy as np

import jax
import jax.numpy as jnp
from jax.experimental import pallas as pl
from jax.experimental.pallas import tpu as pltpu


def _round_up(v, m):
    return -(-v // m) * m


def _replication_matrix(H, W, stride):
    """0/1 matrix M (H*W, H*s*W*s) such that out_flat = x_flat @ M."""
    s = stride
    q = np.arange(H * s * W * s)
    h_src = (q // (W * s)) // s
    w_src = (q % (W * s)) // s
    src = h_src * W + w_src                                  # source flat index per out lane
    return src[None, :] == np.arange(H * W)[:, None]         # bool (H*W, H*s*W*s)


def _upsample_matmul_kernel(x_ref, m_ref, o_ref, *, pieces):
    # x_ref: (n_tile, H*W)       lane-dense input planes.
    # m_ref: (H*W, H*s*W*s)      resident 0/1 replication matrix (bf16).
    # o_ref: (n_tile, H*s*W*s)   lane-dense upsampled planes.
    #
    # Every output element picks up exactly one input element (one 1.0 per M
    # column).  To stay bit-exact on the bf16 MXU, the input is split into
    # `pieces` bf16 mantissa chunks that sum exactly to the input (3 for f32,
    # 2 for f16, 1 for bf16); each chunk is one matmul pass, and accumulating
    # the chunks in f32 reconstructs the input exactly.
    m = m_ref[...]
    res = x_ref[...].astype(jnp.float32)
    out = None
    for i in range(pieces):
        piece = res.astype(jnp.bfloat16)
        d = jnp.dot(piece, m, preferred_element_type=jnp.float32)
        out = d if out is None else out + d
        if i + 1 < pieces:
            res = res - piece.astype(jnp.float32)
    o_ref[...] = out.astype(o_ref.dtype)


def _upsample_broadcast_kernel(x_ref, o_ref, *, stride):
    # Fallback (non-float dtypes / planes too large for a resident M): fused
    # broadcast + row-major reshape; (n, H, s, W, s) flattens to the row-major
    # (H*s, W*s) upsampled plane.
    s = stride
    n, H, W = x_ref.shape
    y = jnp.broadcast_to(x_ref[...][:, :, None, :, None], (n, H, s, W, s))
    o_ref[...] = y.reshape(n, H * s * W * s)


def _vmem_params():
    """(vmem_limit_bytes, per-step output-bytes cap) tuned per TPU generation."""
    try:
        kind = jax.devices()[0].device_kind.lower()
    except Exception:
        kind = ""
    if "v7" in kind or "tpu7" in kind:
        return 48 * 1024 * 1024, 8 * 1024 * 1024   # 64 MiB physical per TC
    if "v6" in kind:
        return 48 * 1024 * 1024, 6 * 1024 * 1024   # 128 MiB physical
    if "v5" in kind:
        return 32 * 1024 * 1024, 3 * 1024 * 1024   # scoped default is only 16 MiB
    return 32 * 1024 * 1024, 4 * 1024 * 1024       # safe everywhere


def _plan_planes_per_block(num_planes, per_plane_bytes, out_plane_bytes, pack,
                           vmem_limit, out_cap, fixed_bytes, total_out_bytes,
                           max_planes_per_block=None):
    """How many whole (H, W) planes one grid step processes."""
    budget = max(vmem_limit - fixed_bytes, per_plane_bytes * pack)
    n = max(budget // per_plane_bytes, 1)
    # Per-step output cap keeps the ~0.35us/step pipeline overhead well under
    # ~10% of each step's HBM DMA time on every generation.
    n = min(n, max(out_cap // out_plane_bytes, 1))
    n = min(n, 4096)                      # bound unrolled-IR size / compile time
    # Megacore + pipelining: once the problem is a few MiB, keep >=4 grid steps
    # (>=2 per v7x TensorCore, with intra-core double buffering).  Tiny
    # problems stay at a single step instead of paying extra fixed overhead.
    if total_out_bytes >= 8 * 1024 * 1024:
        n = min(n, max(-(-num_planes // 4), pack))
    if max_planes_per_block is not None:
        n = min(n, max_planes_per_block)
    if n >= num_planes:
        return num_planes                 # full extent (any size is legal)
    n = max(n - n % pack, pack)           # sublane packing: 8 f32 / 16 bf16 / 32 int8
    return min(n, num_planes)             # ragged last block is masked by Pallas


@functools.partial(jax.jit, static_argnames=("stride", "_max_planes_per_block"))
def upsample(x, stride=2, *, _max_planes_per_block=None):
    """Nearest-neighbor upsample of an NCHW tensor by `stride` along H and W."""
    assert x.ndim == 4, "expected NCHW input"
    B, C, H, W = x.shape
    s = int(stride)
    if s == 1:
        return x

    num_planes = B * C
    p_in = H * W
    p_out = H * s * W * s
    itemsize = jnp.dtype(x.dtype).itemsize
    pack = max(32 // itemsize, 1)
    vmem_limit, out_cap = _vmem_params()

    p_in_pad = _round_up(p_in, 128)                   # vreg lane padding
    p_out_pad = _round_up(p_out, 128)
    total_out_bytes = num_planes * p_out_pad * itemsize
    m_bytes = _round_up(p_in, 16) * p_out_pad * 2     # bf16 M, vreg-padded

    use_matmul = (jnp.issubdtype(x.dtype, jnp.floating)
                  and m_bytes <= 8 * 1024 * 1024)

    if use_matmul:
        # Exact mantissa-piece count: 3 for f32, 2 for f16, 1 for bf16.
        pieces = -(-(jnp.finfo(x.dtype).nmant + 1) // 8)
        per_plane = (2 * p_in_pad * itemsize          # double-buffered input block
                     + 2 * p_out_pad * itemsize       # double-buffered output block
                     + p_in_pad * 6                   # f32 residual + bf16 piece
                     + p_out_pad * 4)                 # f32 accumulator
        fixed = 2 * m_bytes + (2 << 20)               # resident M (+ spare buf) + slack
        n_tile = _plan_planes_per_block(
            num_planes, per_plane, p_out_pad * itemsize, pack,
            vmem_limit, out_cap, fixed, total_out_bytes, _max_planes_per_block)
        grid = (pl.cdiv(num_planes, n_tile),)

        m_mat = jnp.asarray(_replication_matrix(H, W, s), dtype=jnp.bfloat16)
        kernel = functools.partial(_upsample_matmul_kernel, pieces=pieces)
        in_specs = [
            pl.BlockSpec((n_tile, p_in), lambda i: (i, 0)),   # lane-dense input
            pl.BlockSpec((p_in, p_out), lambda i: (0, 0)),    # M resident across steps
        ]
        args = (x.reshape(num_planes, p_in), m_mat)           # free, contiguous reshape
        flops = 2 * pieces * num_planes * p_in * p_out
        extra_bytes = m_bytes
    else:
        # TODO(synk): very large planes would additionally want an intra-plane
        # (H-chunk) grid axis; darknet's upsample never hits that regime.
        in_plane_pad = _round_up(H, pack) * _round_up(W, 128) * itemsize
        per_plane = 2 * in_plane_pad + 3 * p_out_pad * itemsize   # + relayout slack
        n_tile = _plan_planes_per_block(
            num_planes, per_plane, p_out_pad * itemsize, pack,
            vmem_limit, out_cap, 2 << 20, total_out_bytes, _max_planes_per_block)
        grid = (pl.cdiv(num_planes, n_tile),)
        kernel = functools.partial(_upsample_broadcast_kernel, stride=s)
        in_specs = [pl.BlockSpec((n_tile, H, W), lambda i: (i, 0, 0))]
        args = (x.reshape(num_planes, H, W),)
        flops = 0
        extra_bytes = 0

    cost = pl.CostEstimate(
        flops=flops,
        transcendentals=0,
        bytes_accessed=num_planes * p_in * itemsize * (1 + s * s) + extra_bytes)

    out2d = pl.pallas_call(
        kernel,
        out_shape=jax.ShapeDtypeStruct((num_planes, p_out), x.dtype),
        grid=grid,
        in_specs=in_specs,
        out_specs=pl.BlockSpec((n_tile, p_out), lambda i: (i, 0)),
        compiler_params=pltpu.CompilerParams(
            dimension_semantics=("parallel",),
            vmem_limit_bytes=vmem_limit,
        ),
        cost_estimate=cost,
    )(*args)

    return out2d.reshape(B, C, H * s, W * s)                  # free, contiguous


if __name__ == "__main__":
    key = jax.random.PRNGKey(0)
    k1, k2, k3, k4 = jax.random.split(key, 4)

    def ref_upsample(x, s):
        return jnp.repeat(jnp.repeat(x, s, axis=2), s, axis=3)

    # 1) Small shape consistent with the module (B=2, C=4, 16x16 planes), f32.
    x1 = jax.random.normal(k1, (2, 4, 16, 16), dtype=jnp.float32)
    out1 = jax.block_until_ready(upsample(x1, stride=2))
    assert out1.shape == (2, 4, 32, 32), out1.shape
    assert out1.dtype == x1.dtype
    assert jnp.array_equal(out1, ref_upsample(x1, 2)), "mismatch (16x16 f32)"

    # 2) Darknet-like shape: 13x13 planes, many channels (unaligned K=169).
    x2 = jax.random.normal(k2, (2, 48, 13, 13), dtype=jnp.float32)
    out2 = jax.block_until_ready(upsample(x2, stride=2))
    assert out2.shape == (2, 48, 26, 26), out2.shape
    assert jnp.array_equal(out2, ref_upsample(x2, 2)), "mismatch (13x13 f32)"

    # 3) Ragged final block: 10 planes, forced to 8 planes per grid step.
    x3 = jax.random.normal(k3, (1, 10, 13, 13), dtype=jnp.float32)
    out3 = jax.block_until_ready(upsample(x3, stride=2, _max_planes_per_block=8))
    assert out3.shape == (1, 10, 26, 26), out3.shape
    assert jnp.array_equal(out3, ref_upsample(x3, 2)), "mismatch (ragged grid)"

    # 4) bf16 input (single MXU pass) with stride=3.
    x4 = jax.random.normal(k4, (2, 4, 16, 16), dtype=jnp.bfloat16)
    out4 = jax.block_until_ready(upsample(x4, stride=3))
    assert out4.shape == (2, 4, 48, 48), out4.shape
    assert out4.dtype == jnp.bfloat16
    assert jnp.array_equal(out4, ref_upsample(x4, 3)), "mismatch (16x16 bf16 s=3)"

    print("KERNEL_OK")
</pallas_src>

<mosaic_0001>
module attributes {stable_mosaic.version = 11 : i64} {
  func.func @_upsample_matmul_kernel(%arg0: i32, %arg1: memref<8x256xf32, #tpu.memory_space<vmem>>, %arg2: memref<256x1024xbf16, #tpu.memory_space<vmem>>, %arg3: memref<8x1024xf32, #tpu.memory_space<vmem>>) attributes {dimension_semantics = [#tpu.dimension_semantics<parallel>], iteration_bounds = array<i64: 1>, scalar_prefetch = 0 : i64, scratch_operands = 0 : i64, tpu.core_type = #tpu.core_type<tc>, window_params = [{transform_indices = @transform_0, window_bounds = array<i64: 8, 256>}, {pipeline_mode = #tpu.pipeline_mode<synchronous>, transform_indices = @transform_1, window_bounds = array<i64: 256, 1024>}, {transform_indices = @transform_2, window_bounds = array<i64: 8, 1024>}]} {
    %c0 = arith.constant 0 : index
    %c0_0 = arith.constant 0 : index
    %0 = vector.load %arg2[%c0, %c0_0] : memref<256x1024xbf16, #tpu.memory_space<vmem>>, vector<256x1024xbf16>
    %c0_1 = arith.constant 0 : index
    %c0_2 = arith.constant 0 : index
    %1 = vector.load %arg1[%c0_1, %c0_2] : memref<8x256xf32, #tpu.memory_space<vmem>>, vector<8x256xf32>
    %2 = arith.truncf %1 : vector<8x256xf32> to vector<8x256xbf16>
    %cst = arith.constant dense<0.000000e+00> : vector<8x1024xf32>
    %3 = tpu.matmul %2, %0, %cst {dimension_numbers = #tpu.dot_dimension_numbers<[1], [0], [0], [1], [0, 0, 1, 1], [], []>} : vector<8x256xbf16>, vector<256x1024xbf16>, vector<8x1024xf32> -> vector<8x1024xf32>
    %4 = arith.extf %2 : vector<8x256xbf16> to vector<8x256xf32>
    %5 = arith.subf %1, %4 : vector<8x256xf32>
    %6 = arith.truncf %5 : vector<8x256xf32> to vector<8x256xbf16>
    %cst_3 = arith.constant dense<0.000000e+00> : vector<8x1024xf32>
    %7 = tpu.matmul %6, %0, %cst_3 {dimension_numbers = #tpu.dot_dimension_numbers<[1], [0], [0], [1], [0, 0, 1, 1], [], []>} : vector<8x256xbf16>, vector<256x1024xbf16>, vector<8x1024xf32> -> vector<8x1024xf32>
    %8 = arith.addf %3, %7 : vector<8x1024xf32>
    %9 = arith.extf %6 : vector<8x256xbf16> to vector<8x256xf32>
    %10 = arith.subf %5, %9 : vector<8x256xf32>
    %11 = arith.truncf %10 : vector<8x256xf32> to vector<8x256xbf16>
    %cst_4 = arith.constant dense<0.000000e+00> : vector<8x1024xf32>
    %12 = tpu.matmul %11, %0, %cst_4 {dimension_numbers = #tpu.dot_dimension_numbers<[1], [0], [0], [1], [0, 0, 1, 1], [], []>} : vector<8x256xbf16>, vector<256x1024xbf16>, vector<8x1024xf32> -> vector<8x1024xf32>
    %13 = arith.addf %8, %12 : vector<8x1024xf32>
    %c0_5 = arith.constant 0 : index
    %c0_6 = arith.constant 0 : index
    %14 = vector.load %arg3[%c0_5, %c0_6] : memref<8x1024xf32, #tpu.memory_space<vmem>>, vector<8x1024xf32>
    tpu.vector_store %arg3[%c0_5, %c0_6], %13 {strides = array<i32>} : memref<8x1024xf32, #tpu.memory_space<vmem>>, vector<8x1024xf32>,
    return
  }
  func.func @transform_0(%arg0: i32) -> (i32, i32) {
    %c0_i32 = arith.constant 0 : i32
    %c0_i32_0 = arith.constant 0 : i32
    return %arg0, %c0_i32 : i32, i32
  }
  func.func @transform_1(%arg0: i32) -> (i32, i32) {
    %c0_i32 = arith.constant 0 : i32
    %c0_i32_0 = arith.constant 0 : i32
    %c0_i32_1 = arith.constant 0 : i32
    return %c0_i32, %c0_i32_0 : i32, i32
  }
  func.func @transform_2(%arg0: i32) -> (i32, i32) {
    %c0_i32 = arith.constant 0 : i32
    %c0_i32_0 = arith.constant 0 : i32
    return %arg0, %c0_i32 : i32, i32
  }
}

</mosaic_0001>

<llo_original>
// kernel: upsample.1
$region0: #{upsample.1}
  #allocation0 [shape = 'u32[]', space=smem, size = 0x4, offset = 0x4, fixed_abs, tag = 'smem constant byte address 0x4 - core index']
  #allocation1 [shape = 'u32[72,128]{1,0:T(1,128)}', space=vmem, size = 0x9000, scoped, tag = 'internal scratch']
  %s0 = inlined_call_operand.vmem [shape: f32[8,256], index: 0, kind: input, shape index: {}]
  %s1 = inlined_call_operand.hbm [shape: bf16[256,1024], index: 1, kind: input, shape index: {}]
  %s2 = inlined_call_operand.vmem [shape: f32[8,1024], index: 2, kind: output, shape index: {}]
  %s3 = sld [smem:[#allocation0]]
  $region22: #{upsample.1} parent=0
    _
  %s5 = ssub.s32 1, %s3
  %s6 = scalar_select 0, %s5, %s3
  $region1: #{upsample.1} parent=0
    #allocation2 [shape = 'u8[524288]{0}', space=vmem, size = 0x80000, scoped, tag = 'input window, operand 1, single buffered']
    #allocation3 [shape = 's32[1]{0}', space=sflag, size = 0x4, scoped, tag = 'scoped memory for upsample.1']
    %7 = vsyncpa [#allocation3], 0
    // Predicated region
    $region2: #{upsample.1} parent=1 // pred_check
      _
    $region3: #{upsample.1} parent=1 // pred_check_branch
      %9 = sbr.rel (0) target = $region5
    $region4: #{upsample.1} parent=1 // pred_region
      _
    $region5: #{upsample.1} parent=1 // pred_fallthru
      _
    // Predicated region
    $region6: #{upsample.1} parent=1 // pred_check
      _
    $region7: #{upsample.1} parent=1 // pred_check_branch
      %11 = sbr.rel (0) target = $region9
    $region8: #{upsample.1} parent=1 // pred_region
      %13 = vsyncadd [#allocation3], 0
      %s14 = sshll.u32 %s1, 4
      %s15 = int_to_ptr.hbm [resolvable:$true] %s14
      %s16 = sshll.u32 [#allocation2], 4
      %s17 = int_to_ptr.vmem [resolvable:$true] %s16
      %22 = dma.hbm_to_vmem [thread:$0]  %s15, 16384, %s17, [#allocation3], 512, 512, 32
    $region9: #{upsample.1} parent=1 // pred_fallthru
      _
    // Predicated region
    $region10: #{upsample.1} parent=1 // pred_check
      _
    $region11: #{upsample.1} parent=1 // pred_check_branch
      %24 = sbr.rel (0) target = $region13
    $region12: #{upsample.1} parent=1 // pred_region
      %26 = dma.done [#allocation3], 16384
    $region13: #{upsample.1} parent=1 // pred_fallthru
      _
    %v27 = vld [vmem:[#allocation2] sm:$0xff]
    %v28 = vld [vmem:[#allocation2 + $0x8] sm:$0xff]
    %v29 = vld [vmem:[#allocation2 + $0x10] sm:$0xff]
    %v30 = vld [vmem:[#allocation2 + $0x18] sm:$0xff]
    %v31 = vld [vmem:[#allocation2 + $0x20] sm:$0xff]
    %v32 = vld [vmem:[#allocation2 + $0x28] sm:$0xff]
    %v33 = vld [vmem:[#allocation2 + $0x30] sm:$0xff]
    %v34 = vld [vmem:[#allocation2 + $0x38] sm:$0xff]
    %v35 = vld [vmem:[#allocation2 + $0x40] sm:$0xff]
    %v36 = vld [vmem:[#allocation2 + $0x48] sm:$0xff]
    %v37 = vld [vmem:[#allocation2 + $0x50] sm:$0xff]
    %v38 = vld [vmem:[#allocation2 + $0x58] sm:$0xff]
    %v39 = vld [vmem:[#allocation2 + $0x60] sm:$0xff]
    %v40 = vld [vmem:[#allocation2 + $0x68] sm:$0xff]
    %v41 = vld [vmem:[#allocation2 + $0x70] sm:$0xff]
    %v42 = vld [vmem:[#allocation2 + $0x78] sm:$0xff]
    %v43 = vld [vmem:[#allocation2 + $0x80] sm:$0xff]
    %v44 = vld [vmem:[#allocation2 + $0x88] sm:$0xff]
    %v45 = vld [vmem:[#allocation2 + $0x90] sm:$0xff]
    %v46 = vld [vmem:[#allocation2 + $0x98] sm:$0xff]
    %v47 = vld [vmem:[#allocation2 + $0xa0] sm:$0xff]
    %v48 = vld [vmem:[#allocation2 + $0xa8] sm:$0xff]
    %v49 = vld [vmem:[#allocation2 + $0xb0] sm:$0xff]
    %v50 = vld [vmem:[#allocation2 + $0xb8] sm:$0xff]
    %v51 = vld [vmem:[#allocation2 + $0xc0] sm:$0xff]
    %v52 = vld [vmem:[#allocation2 + $0xc8] sm:$0xff]
    %v53 = vld [vmem:[#allocation2 + $0xd0] sm:$0xff]
    %v54 = vld [vmem:[#allocation2 + $0xd8] sm:$0xff]
    %v55 = vld [vmem:[#allocation2 + $0xe0] sm:$0xff]
    %v56 = vld [vmem:[#allocation2 + $0xe8] sm:$0xff]
    %v57 = vld [vmem:[#allocation2 + $0xf0] sm:$0xff]
    %v58 = vld [vmem:[#allocation2 + $0xf8] sm:$0xff]
    %v59 = vld [vmem:[#allocation2 + $0x100] sm:$0xff]
    %v60 = vld [vmem:[#allocation2 + $0x108] sm:$0xff]
    %v61 = vld [vmem:[#allocation2 + $0x110] sm:$0xff]
    %v62 = vld [vmem:[#allocation2 + $0x118] sm:$0xff]
    %v63 = vld [vmem:[#allocation2 + $0x120] sm:$0xff]
    %v64 = vld [vmem:[#allocation2 + $0x128] sm:$0xff]
    %v65 = vld [vmem:[#allocation2 + $0x130] sm:$0xff]
    %v66 = vld [vmem:[#allocation2 + $0x138] sm:$0xff]
    %v67 = vld [vmem:[#allocation2 + $0x140] sm:$0xff]
    %v68 = vld [vmem:[#allocation2 + $0x148] sm:$0xff]
    %v69 = vld [vmem:[#allocation2 + $0x150] sm:$0xff]
    %v70 = vld [vmem:[#allocation2 + $0x158] sm:$0xff]
    %v71 = vld [vmem:[#allocation2 + $0x160] sm:$0xff]
    %v72 = vld [vmem:[#allocation2 + $0x168] sm:$0xff]
    %v73 = vld [vmem:[#allocation2 + $0x170] sm:$0xff]
    %v74 = vld [vmem:[#allocation2 + $0x178] sm:$0xff]
    %v75 = vld [vmem:[#allocation2 + $0x180] sm:$0xff]
    %v76 = vld [vmem:[#allocation2 + $0x188] sm:$0xff]
    %v77 = vld [vmem:[#allocation2 + $0x190] sm:$0xff]
    %v78 = vld [vmem:[#allocation2 + $0x198] sm:$0xff]
    %v79 = vld [vmem:[#allocation2 + $0x1a0] sm:$0xff]
    %v80 = vld [vmem:[#allocation2 + $0x1a8] sm:$0xff]
    %v81 = vld [vmem:[#allocation2 + $0x1b0] sm:$0xff]
    %v82 = vld [vmem:[#allocation2 + $0x1b8] sm:$0xff]
    %v83 = vld [vmem:[#allocation2 + $0x1c0] sm:$0xff]
    %v84 = vld [vmem:[#allocation2 + $0x1c8] sm:$0xff]
    %v85 = vld [vmem:[#allocation2 + $0x1d0] sm:$0xff]
    %v86 = vld [vmem:[#allocation2 + $0x1d8] sm:$0xff]
    %v87 = vld [vmem:[#allocation2 + $0x1e0] sm:$0xff]
    %v88 = vld [vmem:[#allocation2 + $0x1e8] sm:$0xff]
    %v89 = vld [vmem:[#allocation2 + $0x1f0] sm:$0xff]
    %v90 = vld [vmem:[#allocation2 + $0x1f8] sm:$0xff]
    %v91 = vld [vmem:[#allocation2 + $0x200] sm:$0xff]
    %v92 = vld [vmem:[#allocation2 + $0x208] sm:$0xff]
    %v93 = vld [vmem:[#allocation2 + $0x210] sm:$0xff]
    %v94 = vld [vmem:[#allocation2 + $0x218] sm:$0xff]
    %v95 = vld [vmem:[#allocation2 + $0x220] sm:$0xff]
    %v96 = vld [vmem:[#allocation2 + $0x228] sm:$0xff]
    %v97 = vld [vmem:[#allocation2 + $0x230] sm:$0xff]
    %v98 = vld [vmem:[#allocation2 + $0x238] sm:$0xff]
    %v99 = vld [vmem:[#allocation2 + $0x240] sm:$0xff]
    %v100 = vld [vmem:[#allocation2 + $0x248] sm:$0xff]
    %v101 = vld [vmem:[#allocation2 + $0x250] sm:$0xff]
    %v102 = vld [vmem:[#allocation2 + $0x258] sm:$0xff]
    %v103 = vld [vmem:[#allocation2 + $0x260] sm:$0xff]
    %v104 = vld [vmem:[#allocation2 + $0x268] sm:$0xff]
    %v105 = vld [vmem:[#allocation2 + $0x270] sm:$0xff]
    %v106 = vld [vmem:[#allocation2 + $0x278] sm:$0xff]
    %v107 = vld [vmem:[#allocation2 + $0x280] sm:$0xff]
    %v108 = vld [vmem:[#allocation2 + $0x288] sm:$0xff]
    %v109 = vld [vmem:[#allocation2 + $0x290] sm:$0xff]
    %v110 = vld [vmem:[#allocation2 + $0x298] sm:$0xff]
    %v111 = vld [vmem:[#allocation2 + $0x2a0] sm:$0xff]
    %v112 = vld [vmem:[#allocation2 + $0x2a8] sm:$0xff]
    %v113 = vld [vmem:[#allocation2 + $0x2b0] sm:$0xff]
    %v114 = vld [vmem:[#allocation2 + $0x2b8] sm:$0xff]
    %v115 = vld [vmem:[#allocation2 + $0x2c0] sm:$0xff]
    %v116 = vld [vmem:[#allocation2 + $0x2c8] sm:$0xff]
    %v117 = vld [vmem:[#allocation2 + $0x2d0] sm:$0xff]
    %v118 = vld [vmem:[#allocation2 + $0x2d8] sm:$0xff]
    %v119 = vld [vmem:[#allocation2 + $0x2e0] sm:$0xff]
    %v120 = vld [vmem:[#allocation2 + $0x2e8] sm:$0xff]
    %v121 = vld [vmem:[#allocation2 + $0x2f0] sm:$0xff]
    %v122 = vld [vmem:[#allocation2 + $0x2f8] sm:$0xff]
    %v123 = vld [vmem:[#allocation2 + $0x300] sm:$0xff]
    %v124 = vld [vmem:[#allocation2 + $0x308] sm:$0xff]
    %v125 = vld [vmem:[#allocation2 + $0x310] sm:$0xff]
    %v126 = vld [vmem:[#allocation2 + $0x318] sm:$0xff]
    %v127 = vld [vmem:[#allocation2 + $0x320] sm:$0xff]
    %v128 = vld [vmem:[#allocation2 + $0x328] sm:$0xff]
    %v129 = vld [vmem:[#allocation2 + $0x330] sm:$0xff]
    %v130 = vld [vmem:[#allocation2 + $0x338] sm:$0xff]
    %v131 = vld [vmem:[#allocation2 + $0x340] sm:$0xff]
    %v132 = vld [vmem:[#allocation2 + $0x348] sm:$0xff]
    %v133 = vld [vmem:[#allocation2 + $0x350] sm:$0xff]
    %v134 = vld [vmem:[#allocation2 + $0x358] sm:$0xff]
    %v135 = vld [vmem:[#allocation2 + $0x360] sm:$0xff]
    %v136 = vld [vmem:[#allocation2 + $0x368] sm:$0xff]
    %v137 = vld [vmem:[#allocation2 + $0x370] sm:$0xff]
    %v138 = vld [vmem:[#allocation2 + $0x378] sm:$0xff]
    %v139 = vld [vmem:[#allocation2 + $0x380] sm:$0xff]
    %v140 = vld [vmem:[#allocation2 + $0x388] sm:$0xff]
    %v141 = vld [vmem:[#allocation2 + $0x390] sm:$0xff]
    %v142 = vld [vmem:[#allocation2 + $0x398] sm:$0xff]
    %v143 = vld [vmem:[#allocation2 + $0x3a0] sm:$0xff]
    %v144 = vld [vmem:[#allocation2 + $0x3a8] sm:$0xff]
    %v145 = vld [vmem:[#allocation2 + $0x3b0] sm:$0xff]
    %v146 = vld [vmem:[#allocation2 + $0x3b8] sm:$0xff]
    %v147 = vld [vmem:[#allocation2 + $0x3c0] sm:$0xff]
    %v148 = vld [vmem:[#allocation2 + $0x3c8] sm:$0xff]
    %v149 = vld [vmem:[#allocation2 + $0x3d0] sm:$0xff]
    %v150 = vld [vmem:[#allocation2 + $0x3d8] sm:$0xff]
    %v151 = vld [vmem:[#allocation2 + $0x3e0] sm:$0xff]
    %v152 = vld [vmem:[#allocation2 + $0x3e8] sm:$0xff]
    %v153 = vld [vmem:[#allocation2 + $0x3f0] sm:$0xff]
    %v154 = vld [vmem:[#allocation2 + $0x3f8] sm:$0xff]
    %v155 = vld [vmem:[%s0] sm:$0xff]
    %v156 = vld [vmem:[%s0 + $0x8] sm:$0xff]
    %v157 = vpack.c.bf16 %v156, %v155
    %v158 = vunpack.c.l.bf16 %v157
    %v159 = vunpack.c.h.bf16 %v157
    %v160 = vsub.f32 %v155, %v158
    %v161 = vsub.f32 %v156, %v159
    %v162 = vpack.c.bf16 %v161, %v160
    %v164 = vunpack.c.l.b16 %v162
    %v165 = vunpack.c.h.b16 %v162
    %v166 = vpack.c.b16 %v164, %v164
    %v167 = vpack.c.b16 %v165, %v165
    %v298 = vunpack.c.l.b16 %v27
    %v299 = vunpack.c.h.b16 %v27
    %v300 = vunpack.c.l.b16 %v28
    %v301 = vunpack.c.h.b16 %v28
    %v302 = vunpack.c.l.b16 %v29
    %v303 = vunpack.c.h.b16 %v29
    %v304 = vunpack.c.l.b16 %v30
    %v305 = vunpack.c.h.b16 %v30
    %v306 = vunpack.c.l.b16 %v31
    %v307 = vunpack.c.h.b16 %v31
    %v308 = vunpack.c.l.b16 %v32
    %v309 = vunpack.c.h.b16 %v32
    %v310 = vunpack.c.l.b16 %v33
    %v311 = vunpack.c.h.b16 %v33
    %v312 = vunpack.c.l.b16 %v34
    %v313 = vunpack.c.h.b16 %v34
    %v314 = vunpack.c.l.b16 %v35
    %v315 = vunpack.c.h.b16 %v35
    %v316 = vunpack.c.l.b16 %v36
    %v317 = vunpack.c.h.b16 %v36
    %v318 = vunpack.c.l.b16 %v37
    %v319 = vunpack.c.h.b16 %v37
    %v320 = vunpack.c.l.b16 %v38
    %v321 = vunpack.c.h.b16 %v38
    %v322 = vunpack.c.l.b16 %v39
    %v323 = vunpack.c.h.b16 %v39
    %v324 = vunpack.c.l.b16 %v40
    %v325 = vunpack.c.h.b16 %v40
    %v326 = vunpack.c.l.b16 %v41
    %v327 = vunpack.c.h.b16 %v41
    %v328 = vunpack.c.l.b16 %v42
    %v329 = vunpack.c.h.b16 %v42
    %v330 = vunpack.c.l.b16 %v43
    %v331 = vunpack.c.h.b16 %v43
    %v332 = vunpack.c.l.b16 %v44
    %v333 = vunpack.c.h.b16 %v44
    %v334 = vunpack.c.l.b16 %v45
    %v335 = vunpack.c.h.b16 %v45
    %v336 = vunpack.c.l.b16 %v46
    %v337 = vunpack.c.h.b16 %v46
    %v338 = vunpack.c.l.b16 %v47
    %v339 = vunpack.c.h.b16 %v47
    %v340 = vunpack.c.l.b16 %v48
    %v341 = vunpack.c.h.b16 %v48
    %v342 = vunpack.c.l.b16 %v49
    %v343 = vunpack.c.h.b16 %v49
    %v344 = vunpack.c.l.b16 %v50
    %v345 = vunpack.c.h.b16 %v50
    %v346 = vunpack.c.l.b16 %v51
    %v347 = vunpack.c.h.b16 %v51
    %v348 = vunpack.c.l.b16 %v52
    %v349 = vunpack.c.h.b16 %v52
    %v350 = vunpack.c.l.b16 %v53
    %v351 = vunpack.c.h.b16 %v53
    %v352 = vunpack.c.l.b16 %v54
    %v353 = vunpack.c.h.b16 %v54
    %v354 = vunpack.c.l.b16 %v55
    %v355 = vunpack.c.h.b16 %v55
    %v356 = vunpack.c.l.b16 %v56
    %v357 = vunpack.c.h.b16 %v56
    %v358 = vunpack.c.l.b16 %v57
    %v359 = vunpack.c.h.b16 %v57
    %v360 = vunpack.c.l.b16 %v58
    %v361 = vunpack.c.h.b16 %v58
    %v362 = vunpack.c.l.b16 %v59
    %v363 = vunpack.c.h.b16 %v59
    %v364 = vunpack.c.l.b16 %v60
    %v365 = vunpack.c.h.b16 %v60
    %v366 = vunpack.c.l.b16 %v61
    %v367 = vunpack.c.h.b16 %v61
    %v368 = vunpack.c.l.b16 %v62
    %v369 = vunpack.c.h.b16 %v62
    %v370 = vunpack.c.l.b16 %v63
    %v371 = vunpack.c.h.b16 %v63
    %v372 = vunpack.c.l.b16 %v64
    %v373 = vunpack.c.h.b16 %v64
    %v374 = vunpack.c.l.b16 %v65
    %v375 = vunpack.c.h.b16 %v65
    %v376 = vunpack.c.l.b16 %v66
    %v377 = vunpack.c.h.b16 %v66
    %v378 = vunpack.c.l.b16 %v67
    %v379 = vunpack.c.h.b16 %v67
    %v380 = vunpack.c.l.b16 %v68
    %v381 = vunpack.c.h.b16 %v68
    %v382 = vunpack.c.l.b16 %v69
    %v383 = vunpack.c.h.b16 %v69
    %v384 = vunpack.c.l.b16 %v70
    %v385 = vunpack.c.h.b16 %v70
    %v386 = vunpack.c.l.b16 %v71
    %v387 = vunpack.c.h.b16 %v71
    %v388 = vunpack.c.l.b16 %v72
    %v389 = vunpack.c.h.b16 %v72
    %v390 = vunpack.c.l.b16 %v73
    %v391 = vunpack.c.h.b16 %v73
    %v392 = vunpack.c.l.b16 %v74
    %v393 = vunpack.c.h.b16 %v74
    %v394 = vunpack.c.l.b16 %v75
    %v395 = vunpack.c.h.b16 %v75
    %v396 = vunpack.c.l.b16 %v76
    %v397 = vunpack.c.h.b16 %v76
    %v398 = vunpack.c.l.b16 %v77
    %v399 = vunpack.c.h.b16 %v77
    %v400 = vunpack.c.l.b16 %v78
    %v401 = vunpack.c.h.b16 %v78
    %v402 = vunpack.c.l.b16 %v79
    %v403 = vunpack.c.h.b16 %v79
    %v404 = vunpack.c.l.b16 %v80
    %v405 = vunpack.c.h.b16 %v80
    %v406 = vunpack.c.l.b16 %v81
    %v407 = vunpack.c.h.b16 %v81
    %v408 = vunpack.c.l.b16 %v82
    %v409 = vunpack.c.h.b16 %v82
    %v410 = vunpack.c.l.b16 %v83
    %v411 = vunpack.c.h.b16 %v83
    %v412 = vunpack.c.l.b16 %v84
    %v413 = vunpack.c.h.b16 %v84
    %v414 = vunpack.c.l.b16 %v85
    %v415 = vunpack.c.h.b16 %v85
    %v416 = vunpack.c.l.b16 %v86
    %v417 = vunpack.c.h.b16 %v86
    %v418 = vunpack.c.l.b16 %v87
    %v419 = vunpack.c.h.b16 %v87
    %v420 = vunpack.c.l.b16 %v88
    %v421 = vunpack.c.h.b16 %v88
    %v422 = vunpack.c.l.b16 %v89
    %v423 = vunpack.c.h.b16 %v89
    %v424 = vunpack.c.l.b16 %v90
    %v425 = vunpack.c.h.b16 %v90
    %v426 = vunpack.c.l.b16 %v91
    %v427 = vunpack.c.h.b16 %v91
    %v428 = vunpack.c.l.b16 %v92
    %v429 = vunpack.c.h.b16 %v92
    %v430 = vunpack.c.l.b16 %v93
    %v431 = vunpack.c.h.b16 %v93
    %v432 = vunpack.c.l.b16 %v94
    %v433 = vunpack.c.h.b16 %v94
    %v434 = vunpack.c.l.b16 %v95
    %v435 = vunpack.c.h.b16 %v95
    %v436 = vunpack.c.l.b16 %v96
    %v437 = vunpack.c.h.b16 %v96
    %v438 = vunpack.c.l.b16 %v97
    %v439 = vunpack.c.h.b16 %v97
    %v440 = vunpack.c.l.b16 %v98
    %v441 = vunpack.c.h.b16 %v98
    %v442 = vunpack.c.l.b16 %v99
    %v443 = vunpack.c.h.b16 %v99
    %v444 = vunpack.c.l.b16 %v100
    %v445 = vunpack.c.h.b16 %v100
    %v446 = vunpack.c.l.b16 %v101
    %v447 = vunpack.c.h.b16 %v101
    %v448 = vunpack.c.l.b16 %v102
    %v449 = vunpack.c.h.b16 %v102
    %v450 = vunpack.c.l.b16 %v103
    %v451 = vunpack.c.h.b16 %v103
    %v452 = vunpack.c.l.b16 %v104
    %v453 = vunpack.c.h.b16 %v104
    %v454 = vunpack.c.l.b16 %v105
    %v455 = vunpack.c.h.b16 %v105
    %v456 = vunpack.c.l.b16 %v106
    %v457 = vunpack.c.h.b16 %v106
    %v458 = vunpack.c.l.b16 %v107
    %v459 = vunpack.c.h.b16 %v107
    %v460 = vunpack.c.l.b16 %v108
    %v461 = vunpack.c.h.b16 %v108
    %v462 = vunpack.c.l.b16 %v109
    %v463 = vunpack.c.h.b16 %v109
    %v464 = vunpack.c.l.b16 %v110
    %v465 = vunpack.c.h.b16 %v110
    %v466 = vunpack.c.l.b16 %v111
    %v467 = vunpack.c.h.b16 %v111
    %v468 = vunpack.c.l.b16 %v112
    %v469 = vunpack.c.h.b16 %v112
    %v470 = vunpack.c.l.b16 %v113
    %v471 = vunpack.c.h.b16 %v113
    %v472 = vunpack.c.l.b16 %v114
    %v473 = vunpack.c.h.b16 %v114
    %v474 = vunpack.c.l.b16 %v115
    %v475 = vunpack.c.h.b16 %v115
    %v476 = vunpack.c.l.b16 %v116
    %v477 = vunpack.c.h.b16 %v116
    %v478 = vunpack.c.l.b16 %v117
    %v479 = vunpack.c.h.b16 %v117
    %v480 = vunpack.c.l.b16 %v118
    %v481 = vunpack.c.h.b16 %v118
    %v482 = vunpack.c.l.b16 %v119
    %v483 = vunpack.c.h.b16 %v119
    %v484 = vunpack.c.l.b16 %v120
    %v485 = vunpack.c.h.b16 %v120
    %v486 = vunpack.c.l.b16 %v121
    %v487 = vunpack.c.h.b16 %v121
    %v488 = vunpack.c.l.b16 %v122
    %v489 = vunpack.c.h.b16 %v122
    %v490 = vunpack.c.l.b16 %v123
    %v491 = vunpack.c.h.b16 %v123
    %v492 = vunpack.c.l.b16 %v124
    %v493 = vunpack.c.h.b16 %v124
    %v494 = vunpack.c.l.b16 %v125
    %v495 = vunpack.c.h.b16 %v125
    %v496 = vunpack.c.l.b16 %v126
    %v497 = vunpack.c.h.b16 %v126
    %v498 = vunpack.c.l.b16 %v127
    %v499 = vunpack.c.h.b16 %v127
    %v500 = vunpack.c.l.b16 %v128
    %v501 = vunpack.c.h.b16 %v128
    %v502 = vunpack.c.l.b16 %v129
    %v503 = vunpack.c.h.b16 %v129
    %v504 = vunpack.c.l.b16 %v130
    %v505 = vunpack.c.h.b16 %v130
    %v506 = vunpack.c.l.b16 %v131
    %v507 = vunpack.c.h.b16 %v131
    %v508 = vunpack.c.l.b16 %v132
    %v509 = vunpack.c.h.b16 %v132
    %v510 = vunpack.c.l.b16 %v133
    %v511 = vunpack.c.h.b16 %v133
    %v512 = vunpack.c.l.b16 %v134
    %v513 = vunpack.c.h.b16 %v134
    %v514 = vunpack.c.l.b16 %v135
    %v515 = vunpack.c.h.b16 %v135
    %v516 = vunpack.c.l.b16 %v136
    %v517 = vunpack.c.h.b16 %v136
    %v518 = vunpack.c.l.b16 %v137
    %v519 = vunpack.c.h.b16 %v137
    %v520 = vunpack.c.l.b16 %v138
    %v521 = vunpack.c.h.b16 %v138
    %v522 = vunpack.c.l.b16 %v139
    %v523 = vunpack.c.h.b16 %v139
    %v524 = vunpack.c.l.b16 %v140
    %v525 = vunpack.c.h.b16 %v140
    %v526 = vunpack.c.l.b16 %v141
    %v527 = vunpack.c.h.b16 %v141
    %v528 = vunpack.c.l.b16 %v142
    %v529 = vunpack.c.h.b16 %v142
    %v530 = vunpack.c.l.b16 %v143
    %v531 = vunpack.c.h.b16 %v143
    %v532 = vunpack.c.l.b16 %v144
    %v533 = vunpack.c.h.b16 %v144
    %v534 = vunpack.c.l.b16 %v145
    %v535 = vunpack.c.h.b16 %v145
    %v536 = vunpack.c.l.b16 %v146
    %v537 = vunpack.c.h.b16 %v146
    %v538 = vunpack.c.l.b16 %v147
    %v539 = vunpack.c.h.b16 %v147
    %v540 = vunpack.c.l.b16 %v148
    %v541 = vunpack.c.h.b16 %v148
    %v542 = vunpack.c.l.b16 %v149
    %v543 = vunpack.c.h.b16 %v149
    %v544 = vunpack.c.l.b16 %v150
    %v545 = vunpack.c.h.b16 %v150
    %v546 = vunpack.c.l.b16 %v151
    %v547 = vunpack.c.h.b16 %v151
    %v548 = vunpack.c.l.b16 %v152
    %v549 = vunpack.c.h.b16 %v152
    %v550 = vunpack.c.l.b16 %v153
    %v551 = vunpack.c.h.b16 %v153
    %v552 = vunpack.c.l.b16 %v154
    %v553 = vunpack.c.h.b16 %v154
    %v554 = vpack.c.b16 %v306, %v298
    %v555 = vpack.c.b16 %v307, %v299
    %v556 = vpack.c.b16 %v308, %v300
    %v557 = vpack.c.b16 %v309, %v301
    %v558 = vpack.c.b16 %v310, %v302
    %v559 = vpack.c.b16 %v311, %v303
    %v560 = vpack.c.b16 %v312, %v304
    %v561 = vpack.c.b16 %v313, %v305
    %v562 = vpack.c.b16 %v322, %v314
    %v563 = vpack.c.b16 %v323, %v315
    %v564 = vpack.c.b16 %v324, %v316
    %v565 = vpack.c.b16 %v325, %v317
    %v566 = vpack.c.b16 %v326, %v318
    %v567 = vpack.c.b16 %v327, %v319
    %v568 = vpack.c.b16 %v328, %v320
    %v569 = vpack.c.b16 %v329, %v321
    %v570 = vpack.c.b16 %v338, %v330
    %v571 = vpack.c.b16 %v339, %v331
    %v572 = vpack.c.b16 %v340, %v332
    %v573 = vpack.c.b16 %v341, %v333
    %v574 = vpack.c.b16 %v342, %v334
    %v575 = vpack.c.b16 %v343, %v335
    %v576 = vpack.c.b16 %v344, %v336
    %v577 = vpack.c.b16 %v345, %v337
    %v578 = vpack.c.b16 %v354, %v346
    %v579 = vpack.c.b16 %v355, %v347
    %v580 = vpack.c.b16 %v356, %v348
    %v581 = vpack.c.b16 %v357, %v349
    %v582 = vpack.c.b16 %v358, %v350
    %v583 = vpack.c.b16 %v359, %v351
    %v584 = vpack.c.b16 %v360, %v352
    %v585 = vpack.c.b16 %v361, %v353
    %v586 = vpack.c.b16 %v370, %v362
    %v587 = vpack.c.b16 %v371, %v363
    %v588 = vpack.c.b16 %v372, %v364
    %v589 = vpack.c.b16 %v373, %v365
    %v590 = vpack.c.b16 %v374, %v366
    %v591 = vpack.c.b16 %v375, %v367
    %v592 = vpack.c.b16 %v376, %v368
    %v593 = vpack.c.b16 %v377, %v369
    %v594 = vpack.c.b16 %v386, %v378
    %v595 = vpack.c.b16 %v387, %v379
    %v596 = vpack.c.b16 %v388, %v380
    %v597 = vpack.c.b16 %v389, %v381
    %v598 = vpack.c.b16 %v390, %v382
    %v599 = vpack.c.b16 %v391, %v383
    %v600 = vpack.c.b16 %v392, %v384
    %v601 = vpack.c.b16 %v393, %v385
    %v602 = vpack.c.b16 %v402, %v394
    %v603 = vpack.c.b16 %v403, %v395
    %v604 = vpack.c.b16 %v404, %v396
    %v605 = vpack.c.b16 %v405, %v397
    %v606 = vpack.c.b16 %v406, %v398
    %v607 = vpack.c.b16 %v407, %v399
    %v608 = vpack.c.b16 %v408, %v400
    %v609 = vpack.c.b16 %v409, %v401
    %v610 = vpack.c.b16 %v418, %v410
    %v611 = vpack.c.b16 %v419, %v411
    %v612 = vpack.c.b16 %v420, %v412
    %v613 = vpack.c.b16 %v421, %v413
    %v614 = vpack.c.b16 %v422, %v414
    %v615 = vpack.c.b16 %v423, %v415
    %v616 = vpack.c.b16 %v424, %v416
    %v617 = vpack.c.b16 %v425, %v417
    %v618 = vpack.c.b16 %v434, %v426
    %v619 = vpack.c.b16 %v435, %v427
    %v620 = vpack.c.b16 %v436, %v428
    %v621 = vpack.c.b16 %v437, %v429
    %v622 = vpack.c.b16 %v438, %v430
    %v623 = vpack.c.b16 %v439, %v431
    %v624 = vpack.c.b16 %v440, %v432
    %v625 = vpack.c.b16 %v441, %v433
    %v626 = vpack.c.b16 %v450, %v442
    %v627 = vpack.c.b16 %v451, %v443
    %v628 = vpack.c.b16 %v452, %v444
    %v629 = vpack.c.b16 %v453, %v445
    %v630 = vpack.c.b16 %v454, %v446
    %v631 = vpack.c.b16 %v455, %v447
    %v632 = vpack.c.b16 %v456, %v448
    %v633 = vpack.c.b16 %v457, %v449
    %v634 = vpack.c.b16 %v466, %v458
    %v635 = vpack.c.b16 %v467, %v459
    %v636 = vpack.c.b16 %v468, %v460
    %v637 = vpack.c.b16 %v469, %v461
    %v638 = vpack.c.b16 %v470, %v462
    %v639 = vpack.c.b16 %v471, %v463
    %v640 = vpack.c.b16 %v472, %v464
    %v641 = vpack.c.b16 %v473, %v465
    %v642 = vpack.c.b16 %v482, %v474
    %v643 = vpack.c.b16 %v483, %v475
    %v644 = vpack.c.b16 %v484, %v476
    %v645 = vpack.c.b16 %v485, %v477
    %v646 = vpack.c.b16 %v486, %v478
    %v647 = vpack.c.b16 %v487, %v479
    %v648 = vpack.c.b16 %v488, %v480
    %v649 = vpack.c.b16 %v489, %v481
    %v650 = vpack.c.b16 %v498, %v490
    %v651 = vpack.c.b16 %v499, %v491
    %v652 = vpack.c.b16 %v500, %v492
    %v653 = vpack.c.b16 %v501, %v493
    %v654 = vpack.c.b16 %v502, %v494
    %v655 = vpack.c.b16 %v503, %v495
    %v656 = vpack.c.b16 %v504, %v496
    %v657 = vpack.c.b16 %v505, %v497
    %v658 = vpack.c.b16 %v514, %v506
    %v659 = vpack.c.b16 %v515, %v507
    %v660 = vpack.c.b16 %v516, %v508
    %v661 = vpack.c.b16 %v517, %v509
    %v662 = vpack.c.b16 %v518, %v510
    %v663 = vpack.c.b16 %v519, %v511
    %v664 = vpack.c.b16 %v520, %v512
    %v665 = vpack.c.b16 %v521, %v513
    %v666 = vpack.c.b16 %v530, %v522
    %v667 = vpack.c.b16 %v531, %v523
    %v668 = vpack.c.b16 %v532, %v524
    %v669 = vpack.c.b16 %v533, %v525
    %v670 = vpack.c.b16 %v534, %v526
    %v671 = vpack.c.b16 %v535, %v527
    %v672 = vpack.c.b16 %v536, %v528
    %v673 = vpack.c.b16 %v537, %v529
    %v674 = vpack.c.b16 %v546, %v538
    %v675 = vpack.c.b16 %v547, %v539
    %v676 = vpack.c.b16 %v548, %v540
    %v677 = vpack.c.b16 %v549, %v541
    %v678 = vpack.c.b16 %v550, %v542
    %v679 = vpack.c.b16 %v551, %v543
    %v680 = vpack.c.b16 %v552, %v544
    %v681 = vpack.c.b16 %v553, %v545
    %810 = vmatpush.bf16.msra.mxu0 %v610
    %811 = vmatpush.bf16.msra.mxu0 %v602
    %812 = vmatpush.bf16.msra.mxu0 %v594
    %813 = vmatpush.bf16.msra.mxu0 %v586
    %814 = vmatpush.bf16.msra.mxu0 %v578
    %815 = vmatpush.bf16.msra.mxu0 %v570
    %816 = vmatpush.bf16.msra.mxu0 %v562
    %817 = vmatpush.bf16.msra.mxu0 %v554
    %818 = vmatmul.bf16.gmra.mxu0 %v166
    %v819 = vpop.f32.mrf.mxu0
    %v820 = vadd.f32 0.0, %v819
    %v821 = vpop.f32.mrf.mxu0
    %822 = vdwg.mxu0
    %823 = vmatpush.bf16.msra.mxu0 %v674
    %824 = vmatpush.bf16.msra.mxu0 %v666
    %825 = vmatpush.bf16.msra.mxu0 %v658
    %826 = vmatpush.bf16.msra.mxu0 %v650
    %827 = vmatpush.bf16.msra.mxu0 %v642
    %828 = vmatpush.bf16.msra.mxu0 %v634
    %829 = vmatpush.bf16.msra.mxu0 %v626
    %830 = vmatpush.bf16.msra.mxu0 %v618
    %831 = vmatmul.bf16.gmra.mxu0 %v167
    %v832 = vpop.f32.mrf.mxu0
    %v833 = vadd.f32 %v820, %v832
    %v834 = vpop.f32.mrf.mxu0
    %835 = vdwg.mxu0
    %836 = vmatpush.bf16.msra.mxu0 %v611
    %837 = vmatpush.bf16.msra.mxu0 %v603
    %838 = vmatpush.bf16.msra.mxu0 %v595
    %839 = vmatpush.bf16.msra.mxu0 %v587
    %840 = vmatpush.bf16.msra.mxu0 %v579
    %841 = vmatpush.bf16.msra.mxu0 %v571
    %842 = vmatpush.bf16.msra.mxu0 %v563
    %843 = vmatpush.bf16.msra.mxu0 %v555
    %844 = vmatmul.bf16.gmra.mxu0 %v166
    %v845 = vpop.f32.mrf.mxu0
    %v846 = vadd.f32 0.0, %v845
    %v847 = vpop.f32.mrf.mxu0
    %848 = vdwg.mxu0
    %849 = vmatpush.bf16.msra.mxu0 %v675
    %850 = vmatpush.bf16.msra.mxu0 %v667
    %851 = vmatpush.bf16.msra.mxu0 %v659
    %852 = vmatpush.bf16.msra.mxu0 %v651
    %853 = vmatpush.bf16.msra.mxu0 %v643
    %854 = vmatpush.bf16.msra.mxu0 %v635
    %855 = vmatpush.bf16.msra.mxu0 %v627
    %856 = vmatpush.bf16.msra.mxu0 %v619
    %857 = vmatmul.bf16.gmra.mxu0 %v167
    %v858 = vpop.f32.mrf.mxu0
    %v859 = vadd.f32 %v846, %v858
    %v860 = vpop.f32.mrf.mxu0
    %861 = vdwg.mxu0
    %862 = vmatpush.bf16.msra.mxu0 %v612
    %863 = vmatpush.bf16.msra.mxu0 %v604
    %864 = vmatpush.bf16.msra.mxu0 %v596
    %865 = vmatpush.bf16.msra.mxu0 %v588
    %866 = vmatpush.bf16.msra.mxu0 %v580
    %867 = vmatpush.bf16.msra.mxu0 %v572
    %868 = vmatpush.bf16.msra.mxu0 %v564
    %869 = vmatpush.bf16.msra.mxu0 %v556
    %870 = vmatmul.bf16.gmra.mxu0 %v166
    %v871 = vpop.f32.mrf.mxu0
    %v872 = vadd.f32 0.0, %v871
    %v873 = vpop.f32.mrf.mxu0
    %874 = vdwg.mxu0
    %875 = vmatpush.bf16.msra.mxu0 %v676
    %876 = vmatpush.bf16.msra.mxu0 %v668
    %877 = vmatpush.bf16.msra.mxu0 %v660
    %878 = vmatpush.bf16.msra.mxu0 %v652
    %879 = vmatpush.bf16.msra.mxu0 %v644
    %880 = vmatpush.bf16.msra.mxu0 %v636
    %881 = vmatpush.bf16.msra.mxu0 %v628
    %882 = vmatpush.bf16.msra.mxu0 %v620
    %883 = vmatmul.bf16.gmra.mxu0 %v167
    %v884 = vpop.f32.mrf.mxu0
    %v885 = vadd.f32 %v872, %v884
    %v886 = vpop.f32.mrf.mxu0
    %887 = vdwg.mxu0
    %888 = vmatpush.bf16.msra.mxu0 %v613
    %889 = vmatpush.bf16.msra.mxu0 %v605
    %890 = vmatpush.bf16.msra.mxu0 %v597
    %891 = vmatpush.bf16.msra.mxu0 %v589
    %892 = vmatpush.bf16.msra.mxu0 %v581
    %893 = vmatpush.bf16.msra.mxu0 %v573
    %894 = vmatpush.bf16.msra.mxu0 %v565
    %895 = vmatpush.bf16.msra.mxu0 %v557
    %896 = vmatmul.bf16.gmra.mxu0 %v166
    %v897 = vpop.f32.mrf.mxu0
    %v898 = vadd.f32 0.0, %v897
    %v899 = vpop.f32.mrf.mxu0
    %900 = vdwg.mxu0
    %901 = vmatpush.bf16.msra.mxu0 %v677
    %902 = vmatpush.bf16.msra.mxu0 %v669
    %903 = vmatpush.bf16.msra.mxu0 %v661
    %904 = vmatpush.bf16.msra.mxu0 %v653
    %905 = vmatpush.bf16.msra.mxu0 %v645
    %906 = vmatpush.bf16.msra.mxu0 %v637
    %907 = vmatpush.bf16.msra.mxu0 %v629
    %908 = vmatpush.bf16.msra.mxu0 %v621
    %909 = vmatmul.bf16.gmra.mxu0 %v167
    %v910 = vpop.f32.mrf.mxu0
    %v911 = vadd.f32 %v898, %v910
    %v912 = vpop.f32.mrf.mxu0
    %913 = vdwg.mxu0
    %914 = vmatpush.bf16.msra.mxu0 %v614
    %915 = vmatpush.bf16.msra.mxu0 %v606
    %916 = vmatpush.bf16.msra.mxu0 %v598
    %917 = vmatpush.bf16.msra.mxu0 %v590
    %918 = vmatpush.bf16.msra.mxu0 %v582
    %919 = vmatpush.bf16.msra.mxu0 %v574
    %920 = vmatpush.bf16.msra.mxu0 %v566
    %921 = vmatpush.bf16.msra.mxu0 %v558
    %922 = vmatmul.bf16.gmra.mxu0 %v166
    %v923 = vpop.f32.mrf.mxu0
    %v924 = vadd.f32 0.0, %v923
    %v925 = vpop.f32.mrf.mxu0
    %926 = vdwg.mxu0
    %927 = vmatpush.bf16.msra.mxu0 %v678
    %928 = vmatpush.bf16.msra.mxu0 %v670
    %929 = vmatpush.bf16.msra.mxu0 %v662
    %930 = vmatpush.bf16.msra.mxu0 %v654
    %931 = vmatpush.bf16.msra.mxu0 %v646
    %932 = vmatpush.bf16.msra.mxu0 %v638
    %933 = vmatpush.bf16.msra.mxu0 %v630
    %934 = vmatpush.bf16.msra.mxu0 %v622
    %935 = vmatmul.bf16.gmra.mxu0 %v167
    %v936 = vpop.f32.mrf.mxu0
    %v937 = vadd.f32 %v924, %v936
    %v938 = vpop.f32.mrf.mxu0
    %939 = vdwg.mxu0
    %940 = vmatpush.bf16.msra.mxu0 %v615
    %941 = vmatpush.bf16.msra.mxu0 %v607
    %942 = vmatpush.bf16.msra.mxu0 %v599
    %943 = vmatpush.bf16.msra.mxu0 %v591
    %944 = vmatpush.bf16.msra.mxu0 %v583
    %945 = vmatpush.bf16.msra.mxu0 %v575
    %946 = vmatpush.bf16.msra.mxu0 %v567
    %947 = vmatpush.bf16.msra.mxu0 %v559
    %948 = vmatmul.bf16.gmra.mxu0 %v166
    %v949 = vpop.f32.mrf.mxu0
    %v950 = vadd.f32 0.0, %v949
    %v951 = vpop.f32.mrf.mxu0
    %952 = vdwg.mxu0
    %953 = vmatpush.bf16.msra.mxu0 %v679
    %954 = vmatpush.bf16.msra.mxu0 %v671
    %955 = vmatpush.bf16.msra.mxu0 %v663
    %956 = vmatpush.bf16.msra.mxu0 %v655
    %957 = vmatpush.bf16.msra.mxu0 %v647
    %958 = vmatpush.bf16.msra.mxu0 %v639
    %959 = vmatpush.bf16.msra.mxu0 %v631
    %960 = vmatpush.bf16.msra.mxu0 %v623
    %961 = vmatmul.bf16.gmra.mxu0 %v167
    %v962 = vpop.f32.mrf.mxu0
    %v963 = vadd.f32 %v950, %v962
    %v964 = vpop.f32.mrf.mxu0
    %965 = vdwg.mxu0
    %966 = vmatpush.bf16.msra.mxu0 %v616
    %967 = vmatpush.bf16.msra.mxu0 %v608
    %968 = vmatpush.bf16.msra.mxu0 %v600
    %969 = vmatpush.bf16.msra.mxu0 %v592
    %970 = vmatpush.bf16.msra.mxu0 %v584
    %971 = vmatpush.bf16.msra.mxu0 %v576
    %972 = vmatpush.bf16.msra.mxu0 %v568
    %973 = vmatpush.bf16.msra.mxu0 %v560
    %974 = vmatmul.bf16.gmra.mxu0 %v166
    %v975 = vpop.f32.mrf.mxu0
    %v976 = vadd.f32 0.0, %v975
    %v977 = vpop.f32.mrf.mxu0
    %978 = vdwg.mxu0
    %979 = vmatpush.bf16.msra.mxu0 %v680
    %980 = vmatpush.bf16.msra.mxu0 %v672
    %981 = vmatpush.bf16.msra.mxu0 %v664
    %982 = vmatpush.bf16.msra.mxu0 %v656
    %983 = vmatpush.bf16.msra.mxu0 %v648
    %984 = vmatpush.bf16.msra.mxu0 %v640
    %985 = vmatpush.bf16.msra.mxu0 %v632
    %986 = vmatpush.bf16.msra.mxu0 %v624
    %987 = vmatmul.bf16.gmra.mxu0 %v167
    %v988 = vpop.f32.mrf.mxu0
    %v989 = vadd.f32 %v976, %v988
    %v990 = vpop.f32.mrf.mxu0
    %991 = vdwg.mxu0
    %992 = vmatpush.bf16.msra.mxu0 %v617
    %993 = vmatpush.bf16.msra.mxu0 %v609
    %994 = vmatpush.bf16.msra.mxu0 %v601
    %995 = vmatpush.bf16.msra.mxu0 %v593
    %996 = vmatpush.bf16.msra.mxu0 %v585
    %997 = vmatpush.bf16.msra.mxu0 %v577
    %998 = vmatpush.bf16.msra.mxu0 %v569
    %999 = vmatpush.bf16.msra.mxu0 %v561
    %1000 = vmatmul.bf16.gmra.mxu0 %v166
    %v1001 = vpop.f32.mrf.mxu0
    %v1002 = vadd.f32 0.0, %v1001
    %v1003 = vpop.f32.mrf.mxu0
    %1004 = vdwg.mxu0
    %1005 = vmatpush.bf16.msra.mxu0 %v681
    %1006 = vmatpush.bf16.msra.mxu0 %v673
    %1007 = vmatpush.bf16.msra.mxu0 %v665
    %1008 = vmatpush.bf16.msra.mxu0 %v657
    %1009 = vmatpush.bf16.msra.mxu0 %v649
    %1010 = vmatpush.bf16.msra.mxu0 %v641
    %1011 = vmatpush.bf16.msra.mxu0 %v633
    %1012 = vmatpush.bf16.msra.mxu0 %v625
    %1013 = vmatmul.bf16.gmra.mxu0 %v167
    %v1014 = vpop.f32.mrf.mxu0
    %v1015 = vadd.f32 %v1002, %v1014
    %v1016 = vpop.f32.mrf.mxu0
    %1017 = vdwg.mxu0
    %v1019 = vunpack.c.l.b16 %v157
    %v1020 = vunpack.c.h.b16 %v157
    %v1021 = vpack.c.b16 %v1019, %v1019
    %v1022 = vpack.c.b16 %v1020, %v1020
    %1025 = vmatpush.bf16.msra.mxu0 %v610
    %1026 = vmatpush.bf16.msra.mxu0 %v602
    %1027 = vmatpush.bf16.msra.mxu0 %v594
    %1028 = vmatpush.bf16.msra.mxu0 %v586
    %1029 = vmatpush.bf16.msra.mxu0 %v578
    %1030 = vmatpush.bf16.msra.mxu0 %v570
    %1031 = vmatpush.bf16.msra.mxu0 %v562
    %1032 = vmatpush.bf16.msra.mxu0 %v554
    %1033 = vmatmul.bf16.gmra.mxu0 %v1021
    %v1034 = vpop.f32.mrf.mxu0
    %v1035 = vadd.f32 %v833, %v1034
    %v1036 = vpop.f32.mrf.mxu0
    %1037 = vdwg.mxu0
    %1038 = vmatpush.bf16.msra.mxu0 %v674
    %1039 = vmatpush.bf16.msra.mxu0 %v666
    %1040 = vmatpush.bf16.msra.mxu0 %v658
    %1041 = vmatpush.bf16.msra.mxu0 %v650
    %1042 = vmatpush.bf16.msra.mxu0 %v642
    %1043 = vmatpush.bf16.msra.mxu0 %v634
    %1044 = vmatpush.bf16.msra.mxu0 %v626
    %1045 = vmatpush.bf16.msra.mxu0 %v618
    %1046 = vmatmul.bf16.gmra.mxu0 %v1022
    %v1047 = vpop.f32.mrf.mxu0
    %v1048 = vadd.f32 %v1035, %v1047
    %v1049 = vpop.f32.mrf.mxu0
    %1050 = vdwg.mxu0
    %1051 = vmatpush.bf16.msra.mxu0 %v611
    %1052 = vmatpush.bf16.msra.mxu0 %v603
    %1053 = vmatpush.bf16.msra.mxu0 %v595
    %1054 = vmatpush.bf16.msra.mxu0 %v587
    %1055 = vmatpush.bf16.msra.mxu0 %v579
    %1056 = vmatpush.bf16.msra.mxu0 %v571
    %1057 = vmatpush.bf16.msra.mxu0 %v563
    %1058 = vmatpush.bf16.msra.mxu0 %v555
    %1059 = vmatmul.bf16.gmra.mxu0 %v1021
    %v1060 = vpop.f32.mrf.mxu0
    %v1061 = vadd.f32 %v859, %v1060
    %v1062 = vpop.f32.mrf.mxu0
    %1063 = vdwg.mxu0
    %1064 = vmatpush.bf16.msra.mxu0 %v675
    %1065 = vmatpush.bf16.msra.mxu0 %v667
    %1066 = vmatpush.bf16.msra.mxu0 %v659
    %1067 = vmatpush.bf16.msra.mxu0 %v651
    %1068 = vmatpush.bf16.msra.mxu0 %v643
    %1069 = vmatpush.bf16.msra.mxu0 %v635
    %1070 = vmatpush.bf16.msra.mxu0 %v627
    %1071 = vmatpush.bf16.msra.mxu0 %v619
    %1072 = vmatmul.bf16.gmra.mxu0 %v1022
    %v1073 = vpop.f32.mrf.mxu0
    %v1074 = vadd.f32 %v1061, %v1073
    %v1075 = vpop.f32.mrf.mxu0
    %1076 = vdwg.mxu0
    %1077 = vmatpush.bf16.msra.mxu0 %v612
    %1078 = vmatpush.bf16.msra.mxu0 %v604
    %1079 = vmatpush.bf16.msra.mxu0 %v596
    %1080 = vmatpush.bf16.msra.mxu0 %v588
    %1081 = vmatpush.bf16.msra.mxu0 %v580
    %1082 = vmatpush.bf16.msra.mxu0 %v572
    %1083 = vmatpush.bf16.msra.mxu0 %v564
    %1084 = vmatpush.bf16.msra.mxu0 %v556
    %1085 = vmatmul.bf16.gmra.mxu0 %v1021
    %v1086 = vpop.f32.mrf.mxu0
    %v1087 = vadd.f32 %v885, %v1086
    %v1088 = vpop.f32.mrf.mxu0
    %1089 = vdwg.mxu0
    %1090 = vmatpush.bf16.msra.mxu0 %v676
    %1091 = vmatpush.bf16.msra.mxu0 %v668
    %1092 = vmatpush.bf16.msra.mxu0 %v660
    %1093 = vmatpush.bf16.msra.mxu0 %v652
    %1094 = vmatpush.bf16.msra.mxu0 %v644
    %1095 = vmatpush.bf16.msra.mxu0 %v636
    %1096 = vmatpush.bf16.msra.mxu0 %v628
    %1097 = vmatpush.bf16.msra.mxu0 %v620
    %1098 = vmatmul.bf16.gmra.mxu0 %v1022
    %v1099 = vpop.f32.mrf.mxu0
    %v1100 = vadd.f32 %v1087, %v1099
    %v1101 = vpop.f32.mrf.mxu0
    %1102 = vdwg.mxu0
    %1103 = vmatpush.bf16.msra.mxu0 %v613
    %1104 = vmatpush.bf16.msra.mxu0 %v605
    %1105 = vmatpush.bf16.msra.mxu0 %v597
    %1106 = vmatpush.bf16.msra.mxu0 %v589
    %1107 = vmatpush.bf16.msra.mxu0 %v581
    %1108 = vmatpush.bf16.msra.mxu0 %v573
    %1109 = vmatpush.bf16.msra.mxu0 %v565
    %1110 = vmatpush.bf16.msra.mxu0 %v557
    %1111 = vmatmul.bf16.gmra.mxu0 %v1021
    %v1112 = vpop.f32.mrf.mxu0
    %v1113 = vadd.f32 %v911, %v1112
    %v1114 = vpop.f32.mrf.mxu0
    %1115 = vdwg.mxu0
    %1116 = vmatpush.bf16.msra.mxu0 %v677
    %1117 = vmatpush.bf16.msra.mxu0 %v669
    %1118 = vmatpush.bf16.msra.mxu0 %v661
    %1119 = vmatpush.bf16.msra.mxu0 %v653
    %1120 = vmatpush.bf16.msra.mxu0 %v645
    %1121 = vmatpush.bf16.msra.mxu0 %v637
    %1122 = vmatpush.bf16.msra.mxu0 %v629
    %1123 = vmatpush.bf16.msra.mxu0 %v621
    %1124 = vmatmul.bf16.gmra.mxu0 %v1022
    %v1125 = vpop.f32.mrf.mxu0
    %v1126 = vadd.f32 %v1113, %v1125
    %v1127 = vpop.f32.mrf.mxu0
    %1128 = vdwg.mxu0
    %1129 = vmatpush.bf16.msra.mxu0 %v614
    %1130 = vmatpush.bf16.msra.mxu0 %v606
    %1131 = vmatpush.bf16.msra.mxu0 %v598
    %1132 = vmatpush.bf16.msra.mxu0 %v590
    %1133 = vmatpush.bf16.msra.mxu0 %v582
    %1134 = vmatpush.bf16.msra.mxu0 %v574
    %1135 = vmatpush.bf16.msra.mxu0 %v566
    %1136 = vmatpush.bf16.msra.mxu0 %v558
    %1137 = vmatmul.bf16.gmra.mxu0 %v1021
    %v1138 = vpop.f32.mrf.mxu0
    %v1139 = vadd.f32 %v937, %v1138
    %v1140 = vpop.f32.mrf.mxu0
    %1141 = vdwg.mxu0
    %1142 = vmatpush.bf16.msra.mxu0 %v678
    %1143 = vmatpush.bf16.msra.mxu0 %v670
    %1144 = vmatpush.bf16.msra.mxu0 %v662
    %1145 = vmatpush.bf16.msra.mxu0 %v654
    %1146 = vmatpush.bf16.msra.mxu0 %v646
    %1147 = vmatpush.bf16.msra.mxu0 %v638
    %1148 = vmatpush.bf16.msra.mxu0 %v630
    %1149 = vmatpush.bf16.msra.mxu0 %v622
    %1150 = vmatmul.bf16.gmra.mxu0 %v1022
    %v1151 = vpop.f32.mrf.mxu0
    %v1152 = vadd.f32 %v1139, %v1151
    %v1153 = vpop.f32.mrf.mxu0
    %1154 = vdwg.mxu0
    %1155 = vmatpush.bf16.msra.mxu0 %v615
    %1156 = vmatpush.bf16.msra.mxu0 %v607
    %1157 = vmatpush.bf16.msra.mxu0 %v599
    %1158 = vmatpush.bf16.msra.mxu0 %v591
    %1159 = vmatpush.bf16.msra.mxu0 %v583
    %1160 = vmatpush.bf16.msra.mxu0 %v575
    %1161 = vmatpush.bf16.msra.mxu0 %v567
    %1162 = vmatpush.bf16.msra.mxu0 %v559
    %1163 = vmatmul.bf16.gmra.mxu0 %v1021
    %v1164 = vpop.f32.mrf.mxu0
    %v1165 = vadd.f32 %v963, %v1164
    %v1166 = vpop.f32.mrf.mxu0
    %1167 = vdwg.mxu0
    %1168 = vmatpush.bf16.msra.mxu0 %v679
    %1169 = vmatpush.bf16.msra.mxu0 %v671
    %1170 = vmatpush.bf16.msra.mxu0 %v663
    %1171 = vmatpush.bf16.msra.mxu0 %v655
    %1172 = vmatpush.bf16.msra.mxu0 %v647
    %1173 = vmatpush.bf16.msra.mxu0 %v639
    %1174 = vmatpush.bf16.msra.mxu0 %v631
    %1175 = vmatpush.bf16.msra.mxu0 %v623
    %1176 = vmatmul.bf16.gmra.mxu0 %v1022
    %v1177 = vpop.f32.mrf.mxu0
    %v1178 = vadd.f32 %v1165, %v1177
    %v1179 = vpop.f32.mrf.mxu0
    %1180 = vdwg.mxu0
    %1181 = vmatpush.bf16.msra.mxu0 %v616
    %1182 = vmatpush.bf16.msra.mxu0 %v608
    %1183 = vmatpush.bf16.msra.mxu0 %v600
    %1184 = vmatpush.bf16.msra.mxu0 %v592
    %1185 = vmatpush.bf16.msra.mxu0 %v584
    %1186 = vmatpush.bf16.msra.mxu0 %v576
    %1187 = vmatpush.bf16.msra.mxu0 %v568
    %1188 = vmatpush.bf16.msra.mxu0 %v560
    %1189 = vmatmul.bf16.gmra.mxu0 %v1021
    %v1190 = vpop.f32.mrf.mxu0
    %v1191 = vadd.f32 %v989, %v1190
    %v1192 = vpop.f32.mrf.mxu0
    %1193 = vdwg.mxu0
    %1194 = vmatpush.bf16.msra.mxu0 %v680
    %1195 = vmatpush.bf16.msra.mxu0 %v672
    %1196 = vmatpush.bf16.msra.mxu0 %v664
    %1197 = vmatpush.bf16.msra.mxu0 %v656
    %1198 = vmatpush.bf16.msra.mxu0 %v648
    %1199 = vmatpush.bf16.msra.mxu0 %v640
    %1200 = vmatpush.bf16.msra.mxu0 %v632
    %1201 = vmatpush.bf16.msra.mxu0 %v624
    %1202 = vmatmul.bf16.gmra.mxu0 %v1022
    %v1203 = vpop.f32.mrf.mxu0
    %v1204 = vadd.f32 %v1191, %v1203
    %v1205 = vpop.f32.mrf.mxu0
    %1206 = vdwg.mxu0
    %1207 = vmatpush.bf16.msra.mxu0 %v617
    %1208 = vmatpush.bf16.msra.mxu0 %v609
    %1209 = vmatpush.bf16.msra.mxu0 %v601
    %1210 = vmatpush.bf16.msra.mxu0 %v593
    %1211 = vmatpush.bf16.msra.mxu0 %v585
    %1212 = vmatpush.bf16.msra.mxu0 %v577
    %1213 = vmatpush.bf16.msra.mxu0 %v569
    %1214 = vmatpush.bf16.msra.mxu0 %v561
    %1215 = vmatmul.bf16.gmra.mxu0 %v1021
    %v1216 = vpop.f32.mrf.mxu0
    %v1217 = vadd.f32 %v1015, %v1216
    %v1218 = vpop.f32.mrf.mxu0
    %1219 = vdwg.mxu0
    %1220 = vmatpush.bf16.msra.mxu0 %v681
    %1221 = vmatpush.bf16.msra.mxu0 %v673
    %1222 = vmatpush.bf16.msra.mxu0 %v665
    %1223 = vmatpush.bf16.msra.mxu0 %v657
    %1224 = vmatpush.bf16.msra.mxu0 %v649
    %1225 = vmatpush.bf16.msra.mxu0 %v641
    %1226 = vmatpush.bf16.msra.mxu0 %v633
    %1227 = vmatpush.bf16.msra.mxu0 %v625
    %1228 = vmatmul.bf16.gmra.mxu0 %v1022
    %v1229 = vpop.f32.mrf.mxu0
    %v1230 = vadd.f32 %v1217, %v1229
    %v1231 = vpop.f32.mrf.mxu0
    %1232 = vdwg.mxu0
    %v1233 = vunpack.c.l.bf16 %v162
    %v1234 = vunpack.c.h.bf16 %v162
    %v1235 = vsub.f32 %v160, %v1233
    %v1236 = vsub.f32 %v161, %v1234
    %v1237 = vpack.c.bf16 %v1235, %v1235
    %v1238 = vpack.c.bf16 %v1236, %v1236
    %1239 = vmatpush.bf16.msra.mxu0 %v610
    %1240 = vmatpush.bf16.msra.mxu0 %v602
    %1241 = vmatpush.bf16.msra.mxu0 %v594
    %1242 = vmatpush.bf16.msra.mxu0 %v586
    %1243 = vmatpush.bf16.msra.mxu0 %v578
    %1244 = vmatpush.bf16.msra.mxu0 %v570
    %1245 = vmatpush.bf16.msra.mxu0 %v562
    %1246 = vmatpush.bf16.msra.mxu0 %v554
    %1247 = vmatmul.bf16.gmra.mxu0 %v1237
    %v1248 = vpop.f32.mrf.mxu0
    %v1249 = vadd.f32 0.0, %v1248
    %v1250 = vpop.f32.mrf.mxu0
    %1251 = vdwg.mxu0
    %1252 = vmatpush.bf16.msra.mxu0 %v674
    %1253 = vmatpush.bf16.msra.mxu0 %v666
    %1254 = vmatpush.bf16.msra.mxu0 %v658
    %1255 = vmatpush.bf16.msra.mxu0 %v650
    %1256 = vmatpush.bf16.msra.mxu0 %v642
    %1257 = vmatpush.bf16.msra.mxu0 %v634
    %1258 = vmatpush.bf16.msra.mxu0 %v626
    %1259 = vmatpush.bf16.msra.mxu0 %v618
    %1260 = vmatmul.bf16.gmra.mxu0 %v1238
    %v1261 = vpop.f32.mrf.mxu0
    %v1262 = vadd.f32 %v1249, %v1261
    %v1263 = vpop.f32.mrf.mxu0
    %1264 = vdwg.mxu0
    %1265 = vmatpush.bf16.msra.mxu0 %v611
    %1266 = vmatpush.bf16.msra.mxu0 %v603
    %1267 = vmatpush.bf16.msra.mxu0 %v595
    %1268 = vmatpush.bf16.msra.mxu0 %v587
    %1269 = vmatpush.bf16.msra.mxu0 %v579
    %1270 = vmatpush.bf16.msra.mxu0 %v571
    %1271 = vmatpush.bf16.msra.mxu0 %v563
    %1272 = vmatpush.bf16.msra.mxu0 %v555
    %1273 = vmatmul.bf16.gmra.mxu0 %v1237
    %v1274 = vpop.f32.mrf.mxu0
    %v1275 = vadd.f32 0.0, %v1274
    %v1276 = vpop.f32.mrf.mxu0
    %1277 = vdwg.mxu0
    %1278 = vmatpush.bf16.msra.mxu0 %v675
    %1279 = vmatpush.bf16.msra.mxu0 %v667
    %1280 = vmatpush.bf16.msra.mxu0 %v659
    %1281 = vmatpush.bf16.msra.mxu0 %v651
    %1282 = vmatpush.bf16.msra.mxu0 %v643
    %1283 = vmatpush.bf16.msra.mxu0 %v635
    %1284 = vmatpush.bf16.msra.mxu0 %v627
    %1285 = vmatpush.bf16.msra.mxu0 %v619
    %1286 = vmatmul.bf16.gmra.mxu0 %v1238
    %v1287 = vpop.f32.mrf.mxu0
    %v1288 = vadd.f32 %v1275, %v1287
    %v1289 = vpop.f32.mrf.mxu0
    %1290 = vdwg.mxu0
    %1291 = vmatpush.bf16.msra.mxu0 %v612
    %1292 = vmatpush.bf16.msra.mxu0 %v604
    %1293 = vmatpush.bf16.msra.mxu0 %v596
    %1294 = vmatpush.bf16.msra.mxu0 %v588
    %1295 = vmatpush.bf16.msra.mxu0 %v580
    %1296 = vmatpush.bf16.msra.mxu0 %v572
    %1297 = vmatpush.bf16.msra.mxu0 %v564
    %1298 = vmatpush.bf16.msra.mxu0 %v556
    %1299 = vmatmul.bf16.gmra.mxu0 %v1237
    %v1300 = vpop.f32.mrf.mxu0
    %v1301 = vadd.f32 0.0, %v1300
    %v1302 = vpop.f32.mrf.mxu0
    %1303 = vdwg.mxu0
    %1304 = vmatpush.bf16.msra.mxu0 %v676
    %1305 = vmatpush.bf16.msra.mxu0 %v668
    %1306 = vmatpush.bf16.msra.mxu0 %v660
    %1307 = vmatpush.bf16.msra.mxu0 %v652
    %1308 = vmatpush.bf16.msra.mxu0 %v644
    %1309 = vmatpush.bf16.msra.mxu0 %v636
    %1310 = vmatpush.bf16.msra.mxu0 %v628
    %1311 = vmatpush.bf16.msra.mxu0 %v620
    %1312 = vmatmul.bf16.gmra.mxu0 %v1238
    %v1313 = vpop.f32.mrf.mxu0
    %v1314 = vadd.f32 %v1301, %v1313
    %v1315 = vpop.f32.mrf.mxu0
    %1316 = vdwg.mxu0
    %1317 = vmatpush.bf16.msra.mxu0 %v613
    %1318 = vmatpush.bf16.msra.mxu0 %v605
    %1319 = vmatpush.bf16.msra.mxu0 %v597
    %1320 = vmatpush.bf16.msra.mxu0 %v589
    %1321 = vmatpush.bf16.msra.mxu0 %v581
    %1322 = vmatpush.bf16.msra.mxu0 %v573
    %1323 = vmatpush.bf16.msra.mxu0 %v565
    %1324 = vmatpush.bf16.msra.mxu0 %v557
    %1325 = vmatmul.bf16.gmra.mxu0 %v1237
    %v1326 = vpop.f32.mrf.mxu0
    %v1327 = vadd.f32 0.0, %v1326
    %v1328 = vpop.f32.mrf.mxu0
    %1329 = vdwg.mxu0
    %1330 = vmatpush.bf16.msra.mxu0 %v677
    %1331 = vmatpush.bf16.msra.mxu0 %v669
    %1332 = vmatpush.bf16.msra.mxu0 %v661
    %1333 = vmatpush.bf16.msra.mxu0 %v653
    %1334 = vmatpush.bf16.msra.mxu0 %v645
    %1335 = vmatpush.bf16.msra.mxu0 %v637
    %1336 = vmatpush.bf16.msra.mxu0 %v629
    %1337 = vmatpush.bf16.msra.mxu0 %v621
    %1338 = vmatmul.bf16.gmra.mxu0 %v1238
    %v1339 = vpop.f32.mrf.mxu0
    %v1340 = vadd.f32 %v1327, %v1339
    %v1341 = vpop.f32.mrf.mxu0
    %1342 = vdwg.mxu0
    %1343 = vmatpush.bf16.msra.mxu0 %v614
    %1344 = vmatpush.bf16.msra.mxu0 %v606
    %1345 = vmatpush.bf16.msra.mxu0 %v598
    %1346 = vmatpush.bf16.msra.mxu0 %v590
    %1347 = vmatpush.bf16.msra.mxu0 %v582
    %1348 = vmatpush.bf16.msra.mxu0 %v574
    %1349 = vmatpush.bf16.msra.mxu0 %v566
    %1350 = vmatpush.bf16.msra.mxu0 %v558
    %1351 = vmatmul.bf16.gmra.mxu0 %v1237
    %v1352 = vpop.f32.mrf.mxu0
    %v1353 = vadd.f32 0.0, %v1352
    %v1354 = vpop.f32.mrf.mxu0
    %1355 = vdwg.mxu0
    %1356 = vmatpush.bf16.msra.mxu0 %v678
    %1357 = vmatpush.bf16.msra.mxu0 %v670
    %1358 = vmatpush.bf16.msra.mxu0 %v662
    %1359 = vmatpush.bf16.msra.mxu0 %v654
    %1360 = vmatpush.bf16.msra.mxu0 %v646
    %1361 = vmatpush.bf16.msra.mxu0 %v638
    %1362 = vmatpush.bf16.msra.mxu0 %v630
    %1363 = vmatpush.bf16.msra.mxu0 %v622
    %1364 = vmatmul.bf16.gmra.mxu0 %v1238
    %v1365 = vpop.f32.mrf.mxu0
    %v1366 = vadd.f32 %v1353, %v1365
    %v1367 = vpop.f32.mrf.mxu0
    %1368 = vdwg.mxu0
    %1369 = vmatpush.bf16.msra.mxu0 %v615
    %1370 = vmatpush.bf16.msra.mxu0 %v607
    %1371 = vmatpush.bf16.msra.mxu0 %v599
    %1372 = vmatpush.bf16.msra.mxu0 %v591
    %1373 = vmatpush.bf16.msra.mxu0 %v583
    %1374 = vmatpush.bf16.msra.mxu0 %v575
    %1375 = vmatpush.bf16.msra.mxu0 %v567
    %1376 = vmatpush.bf16.msra.mxu0 %v559
    %1377 = vmatmul.bf16.gmra.mxu0 %v1237
    %v1378 = vpop.f32.mrf.mxu0
    %v1379 = vadd.f32 0.0, %v1378
    %v1380 = vpop.f32.mrf.mxu0
    %1381 = vdwg.mxu0
    %1382 = vmatpush.bf16.msra.mxu0 %v679
    %1383 = vmatpush.bf16.msra.mxu0 %v671
    %1384 = vmatpush.bf16.msra.mxu0 %v663
    %1385 = vmatpush.bf16.msra.mxu0 %v655
    %1386 = vmatpush.bf16.msra.mxu0 %v647
    %1387 = vmatpush.bf16.msra.mxu0 %v639
    %1388 = vmatpush.bf16.msra.mxu0 %v631
    %1389 = vmatpush.bf16.msra.mxu0 %v623
    %1390 = vmatmul.bf16.gmra.mxu0 %v1238
    %v1391 = vpop.f32.mrf.mxu0
    %v1392 = vadd.f32 %v1379, %v1391
    %v1393 = vpop.f32.mrf.mxu0
    %1394 = vdwg.mxu0
    %1395 = vmatpush.bf16.msra.mxu0 %v616
    %1396 = vmatpush.bf16.msra.mxu0 %v608
    %1397 = vmatpush.bf16.msra.mxu0 %v600
    %1398 = vmatpush.bf16.msra.mxu0 %v592
    %1399 = vmatpush.bf16.msra.mxu0 %v584
    %1400 = vmatpush.bf16.msra.mxu0 %v576
    %1401 = vmatpush.bf16.msra.mxu0 %v568
    %1402 = vmatpush.bf16.msra.mxu0 %v560
    %1403 = vmatmul.bf16.gmra.mxu0 %v1237
    %v1404 = vpop.f32.mrf.mxu0
    %v1405 = vadd.f32 0.0, %v1404
    %v1406 = vpop.f32.mrf.mxu0
    %1407 = vdwg.mxu0
    %1408 = vmatpush.bf16.msra.mxu0 %v680
    %1409 = vmatpush.bf16.msra.mxu0 %v672
    %1410 = vmatpush.bf16.msra.mxu0 %v664
    %1411 = vmatpush.bf16.msra.mxu0 %v656
    %1412 = vmatpush.bf16.msra.mxu0 %v648
    %1413 = vmatpush.bf16.msra.mxu0 %v640
    %1414 = vmatpush.bf16.msra.mxu0 %v632
    %1415 = vmatpush.bf16.msra.mxu0 %v624
    %1416 = vmatmul.bf16.gmra.mxu0 %v1238
    %v1417 = vpop.f32.mrf.mxu0
    %v1418 = vadd.f32 %v1405, %v1417
    %v1419 = vpop.f32.mrf.mxu0
    %1420 = vdwg.mxu0
    %1421 = vmatpush.bf16.msra.mxu0 %v617
    %1422 = vmatpush.bf16.msra.mxu0 %v609
    %1423 = vmatpush.bf16.msra.mxu0 %v601
    %1424 = vmatpush.bf16.msra.mxu0 %v593
    %1425 = vmatpush.bf16.msra.mxu0 %v585
    %1426 = vmatpush.bf16.msra.mxu0 %v577
    %1427 = vmatpush.bf16.msra.mxu0 %v569
    %1428 = vmatpush.bf16.msra.mxu0 %v561
    %1429 = vmatmul.bf16.gmra.mxu0 %v1237
    %v1430 = vpop.f32.mrf.mxu0
    %v1431 = vadd.f32 0.0, %v1430
    %v1432 = vpop.f32.mrf.mxu0
    %1433 = vdwg.mxu0
    %1434 = vmatpush.bf16.msra.mxu0 %v681
    %1435 = vmatpush.bf16.msra.mxu0 %v673
    %1436 = vmatpush.bf16.msra.mxu0 %v665
    %1437 = vmatpush.bf16.msra.mxu0 %v657
    %1438 = vmatpush.bf16.msra.mxu0 %v649
    %1439 = vmatpush.bf16.msra.mxu0 %v641
    %1440 = vmatpush.bf16.msra.mxu0 %v633
    %1441 = vmatpush.bf16.msra.mxu0 %v625
    %1442 = vmatmul.bf16.gmra.mxu0 %v1238
    %v1443 = vpop.f32.mrf.mxu0
    %v1444 = vadd.f32 %v1431, %v1443
    %v1445 = vpop.f32.mrf.mxu0
    %1446 = vdwg.mxu0
    %v1447 = vadd.f32 %v1048, %v1262
    %v1448 = vadd.f32 %v1074, %v1288
    %v1449 = vadd.f32 %v1100, %v1314
    %v1450 = vadd.f32 %v1126, %v1340
    %v1451 = vadd.f32 %v1152, %v1366
    %v1452 = vadd.f32 %v1178, %v1392
    %v1453 = vadd.f32 %v1204, %v1418
    %v1454 = vadd.f32 %v1230, %v1444
    %1455 = vst [vmem:[%s2] sm:$0xff] %v1447
    %1456 = vst [vmem:[%s2 + $0x8] sm:$0xff] %v1448
    %1457 = vst [vmem:[%s2 + $0x10] sm:$0xff] %v1449
    %1458 = vst [vmem:[%s2 + $0x18] sm:$0xff] %v1450
    %1459 = vst [vmem:[%s2 + $0x20] sm:$0xff] %v1451
    %1460 = vst [vmem:[%s2 + $0x28] sm:$0xff] %v1452
    %1461 = vst [vmem:[%s2 + $0x30] sm:$0xff] %v1453
    %1462 = vst [vmem:[%s2 + $0x38] sm:$0xff] %v1454
    // Predicated region
    $region14: #{upsample.1} parent=1 // pred_check
      _
    $region15: #{upsample.1} parent=1 // pred_check_branch
      %1464 = sbr.rel (0) target = $region17
    $region16: #{upsample.1} parent=1 // pred_region
      _
    $region17: #{upsample.1} parent=1 // pred_fallthru
      _
    // Predicated region
    $region18: #{upsample.1} parent=1 // pred_check
      _
    $region19: #{upsample.1} parent=1 // pred_check_branch
      %1466 = sbr.rel (0) target = $region21
    $region20: #{upsample.1} parent=1 // pred_region
      _
    $region21: #{upsample.1} parent=1 // pred_fallthru
      _
    %1467 = vsyncpa [#allocation3], 1

</llo_original>
